<compile_context>
chip_gen: v5e
topology: v5e:2x2
jax: 0.10.0
libtpu: 0.0.40
codegen_flags: <defaults>
</compile_context>

<pallas_src>
import functools

import jax
import jax.numpy as jnp
from jax.experimental import pallas as pl
from jax.experimental.pallas import tpu as pltpu


def _round_up(x, m):
    return ((x + m - 1) // m) * m


def _lane_pad(d):
    # Lane-dense padding: 128 for small dims; once a dim is big enough that
    # MXU shape matters (v6e/v7x are 2x256x256), align it to 256 instead.
    if d >= 192:
        return _round_up(d, 256)
    return _round_up(d, 128)


def _hlinear_kernel(tids_ref, x_ref, w_ref, b_ref, o_ref, *, act):
    # tids_ref: scalar-prefetched per-tile type ids (consumed by index_maps).
    # x_ref: (tile_m, in_pad)          w_ref: (in_pad, out_pad)
    # b_ref: (1, out_pad) f32          o_ref: (tile_m, out_pad)
    del tids_ref
    y = jnp.dot(x_ref[...], w_ref[...], preferred_element_type=jnp.float32)
    y = y + b_ref[...]                     # f32 bias add, broadcast over rows
    if act == "tanh":
        y = jnp.tanh(y)                    # EUP, f32
    elif act == "relu":
        y = jnp.maximum(y, 0.0)
    elif act != "None":
        raise NotImplementedError(f"Unknown HLinear activation {act}")
    o_ref[...] = y.astype(o_ref.dtype)


@functools.partial(
    jax.jit,
    static_argnames=("types_and_ids", "out_dim", "act", "tile_m",
                     "compute_dtype_name", "out_dtype_name"),
)
def _hlinear_forward(x_dict, w_all, b_all, *, types_and_ids, out_dim, act,
                     tile_m, compute_dtype_name, out_dtype_name):
    """Fused per-node-type Linear+act. Returns dict of [n_nt, out_dim]."""
    compute_dtype = jnp.dtype(compute_dtype_name)
    out_dtype = jnp.dtype(out_dtype_name)
    _, in_pad, out_pad = w_all.shape

    # --- Pack rows of all non-empty node types into one tile-aligned matrix.
    x_blocks = []          # padded per-type row blocks
    tile_type_ids = []     # per-tile weight-slab index
    row_spans = []         # (start_row_in_packed, n_valid_rows) per node type
    row_cursor = 0
    for nt, slab_idx in types_and_ids:
        x = x_dict[nt]
        n, d = x.shape
        if n == 0:
            row_spans.append((row_cursor, 0))
            continue
        n_rows_pad = _round_up(n, tile_m)
        # Single fused cast+pad producer (no zeros + scatter pass over HBM).
        xp = jnp.pad(x.astype(compute_dtype),
                     ((0, n_rows_pad - n), (0, in_pad - d)))
        x_blocks.append(xp)
        tile_type_ids.extend([slab_idx] * (n_rows_pad // tile_m))
        row_spans.append((row_cursor, n))
        row_cursor += n_rows_pad

    num_tiles = len(tile_type_ids)
    if num_tiles == 0:
        # All requested node types are empty: nothing to compute.
        return {nt: jnp.zeros((0, out_dim), out_dtype)
                for nt, _ in types_and_ids}

    x_all = (jnp.concatenate(x_blocks, axis=0)
             if len(x_blocks) > 1 else x_blocks[0])
    type_ids = jnp.asarray(tile_type_ids, dtype=jnp.int32)

    # VMEM budget from the actual double-buffered footprint (x tile + weight
    # slab + bias + out tile), floor 16 MiB, cap 48 MiB (v7x has 64 MiB/TC).
    per_step = (tile_m * in_pad * compute_dtype.itemsize
                + in_pad * out_pad * compute_dtype.itemsize
                + out_pad * 4
                + tile_m * out_pad * out_dtype.itemsize)
    vmem_limit = int(min(48 * 1024 * 1024,
                         max(16 * 1024 * 1024, 4 * per_step)))

    kernel = functools.partial(_hlinear_kernel, act=act)
    y_all = pl.pallas_call(
        kernel,
        out_shape=jax.ShapeDtypeStruct((x_all.shape[0], out_pad), out_dtype),
        grid_spec=pltpu.PrefetchScalarGridSpec(
            num_scalar_prefetch=1,               # type_ids -> SMEM
            grid=(num_tiles,),
            in_specs=[
                # x row tile
                pl.BlockSpec((tile_m, in_pad), lambda i, tids: (i, 0)),
                # per-type weight slab (leading dim squeezed away)
                pl.BlockSpec((None, in_pad, out_pad),
                             lambda i, tids: (tids[i], 0, 0)),
                # per-type bias row
                pl.BlockSpec((None, 1, out_pad),
                             lambda i, tids: (tids[i], 0, 0)),
            ],
            out_specs=pl.BlockSpec((tile_m, out_pad), lambda i, tids: (i, 0)),
        ),
        compiler_params=pltpu.CompilerParams(
            dimension_semantics=("parallel",),    # row tiles are independent
            vmem_limit_bytes=vmem_limit,
        ),
    )(type_ids, x_all, w_all, b_all)

    # --- Unpack: strip row / column padding per node type -------------------
    y_dict = {}
    for (nt, _), (start, n) in zip(types_and_ids, row_spans):
        if n == 0:
            y_dict[nt] = jnp.zeros((0, out_dim), out_dtype)
        else:
            y_dict[nt] = y_all[start:start + n, :out_dim]
    return y_dict


class HLinearPallas:
    """Per-node-type Linear + activation, mirroring HLinear.forward."""

    def __init__(self, out_dim, metadata, in_dims, key, act="tanh",
                 compute_dtype=jnp.bfloat16):
        if act is None:
            act = "None"
        self.out_dim = out_dim
        self.act = act
        self.node_types = list(metadata[0])
        self.type_index = {nt: t for t, nt in enumerate(self.node_types)}
        self.compute_dtype = jnp.dtype(compute_dtype)

        # Lane-dense padded feature / output dims, shared by all slabs.
        self.in_pad = _lane_pad(max(in_dims[nt] for nt in self.node_types))
        self.out_pad = _lane_pad(out_dim)

        # Per-type parameters (stored as (in_dim, out_dim); torch nn.Linear
        # stores (out, in) — transpose when importing torch checkpoints).
        self.params = {}
        w_slabs, b_slabs = [], []
        for nt in self.node_types:
            key, kw, kb = jax.random.split(key, 3)
            in_dim = in_dims[nt]
            scale = (6.0 / (in_dim + out_dim)) ** 0.5
            w = jax.random.uniform(kw, (in_dim, out_dim), jnp.float32,
                                   -scale, scale)
            b = jax.random.uniform(kb, (1, out_dim), jnp.float32,
                                   -scale, scale)
            self.params[nt] = (w, b)
            w_slabs.append(jnp.pad(w.astype(self.compute_dtype),
                                   ((0, self.in_pad - in_dim),
                                    (0, self.out_pad - out_dim))))
            b_slabs.append(jnp.pad(b.astype(jnp.float32),
                                   ((0, 0), (0, self.out_pad - out_dim))))

        # Packed once here; reused by every forward call (no per-call weight
        # re-stacking traffic inside the jitted function).
        self.w_all = jnp.stack(w_slabs, axis=0)   # (num_types, in_pad, out_pad)
        self.b_all = jnp.stack(b_slabs, axis=0)   # (num_types, 1, out_pad)

    def __call__(self, x_dict, tile_m=None, output_dtype=None):
        # Only node types present in x_dict AND having weights are processed
        # (torch iterates x_dict keys).
        types_and_ids = tuple(
            (nt, self.type_index[nt]) for nt in x_dict if nt in self.type_index
        )
        if not types_and_ids:
            return {}

        if tile_m is None:
            # Adaptive tile: no larger than the biggest per-type row count
            # (avoids padding tiny types to huge tiles), capped at 1024.
            max_rows = max(x_dict[nt].shape[0] for nt, _ in types_and_ids)
            tile_m = max(16, min(1024, _round_up(max(max_rows, 1), 16)))
        if tile_m % 16 != 0:
            raise ValueError("tile_m must be a multiple of 16 (bf16 sublanes)")

        if output_dtype is None:
            output_dtype = x_dict[types_and_ids[0][0]].dtype

        return _hlinear_forward(
            x_dict, self.w_all, self.b_all,
            types_and_ids=types_and_ids,
            out_dim=self.out_dim,
            act=self.act,
            tile_m=int(tile_m),
            compute_dtype_name=self.compute_dtype.name,
            out_dtype_name=jnp.dtype(output_dtype).name,
        )


if __name__ == "__main__":
    key = jax.random.PRNGKey(0)

    # Heterogeneous graph metadata: three node types, different feature dims,
    # one of them empty (exercises the degenerate-type guard).
    metadata = (["author", "paper", "venue"], [])
    in_dims = {"author": 32, "paper": 48, "venue": 40}
    num_nodes = {"author": 16, "paper": 24, "venue": 0}
    out_dim = 32

    key, kp = jax.random.split(key)
    model = HLinearPallas(out_dim, metadata, in_dims, kp, act="tanh")

    x_dict = {}
    for nt in metadata[0]:
        key, kx = jax.random.split(key)
        x_dict[nt] = jax.random.normal(
            kx, (num_nodes[nt], in_dims[nt]), jnp.float32
        )

    y_dict = model(x_dict)
    for nt in y_dict:
        jax.block_until_ready(y_dict[nt])

    # Cross-check against a plain f32 JAX reference (kernel uses bf16 MXU
    # inputs with f32 accumulation, so use a loose tolerance).
    ok = True
    for nt in x_dict:
        w, b = model.params[nt]
        ref = jnp.tanh(x_dict[nt] @ w + b)
        ok &= bool(jnp.allclose(y_dict[nt], ref, atol=2e-2, rtol=2e-2))
        ok &= y_dict[nt].shape == (num_nodes[nt], out_dim)
        ok &= y_dict[nt].dtype == x_dict[nt].dtype

    if ok:
        print("KERNEL_OK")
    else:
        print("MISMATCH")
</pallas_src>

<mosaic_0001>
module attributes {stable_mosaic.version = 11 : i64} {
  func.func @_hlinear_kernel(%arg0: i32, %arg1: memref<2xi32, #tpu.memory_space<smem>>, %arg2: memref<32x128xbf16, #tpu.memory_space<vmem>>, %arg3: memref<1x128x128xbf16, #tpu.memory_space<vmem>>, %arg4: memref<1x1x128xf32, #tpu.memory_space<vmem>>, %arg5: memref<32x128xf32, #tpu.memory_space<vmem>>) attributes {dimension_semantics = [#tpu.dimension_semantics<parallel>], iteration_bounds = array<i64: 2>, scalar_prefetch = 1 : i64, scratch_operands = 0 : i64, tpu.core_type = #tpu.core_type<tc>, window_params = [{transform_indices = @transform_0, window_bounds = array<i64: 32, 128>}, {transform_indices = @transform_1, window_bounds = array<i64: 1, 128, 128>}, {transform_indices = @transform_2, window_bounds = array<i64: 1, 1, 128>}, {transform_indices = @transform_3, window_bounds = array<i64: 32, 128>}]} {
    %c0 = arith.constant 0 : index
    %c0_0 = arith.constant 0 : index
    %0 = vector.load %arg2[%c0, %c0_0] : memref<32x128xbf16, #tpu.memory_space<vmem>>, vector<32x128xbf16>
    %c0_1 = arith.constant 0 : index
    %c0_2 = arith.constant 0 : index
    %c0_3 = arith.constant 0 : index
    %1 = vector.load %arg3[%c0_1, %c0_2, %c0_3] : memref<1x128x128xbf16, #tpu.memory_space<vmem>>, vector<1x128x128xbf16>
    %2 = vector.shape_cast %1 : vector<1x128x128xbf16> to vector<128x128xbf16>
    %cst = arith.constant dense<0.000000e+00> : vector<32x128xf32>
    %3 = tpu.matmul %0, %2, %cst {dimension_numbers = #tpu.dot_dimension_numbers<[1], [0], [0], [1], [0, 0, 1, 1], [], []>} : vector<32x128xbf16>, vector<128x128xbf16>, vector<32x128xf32> -> vector<32x128xf32>
    %c0_4 = arith.constant 0 : index
    %c0_5 = arith.constant 0 : index
    %c0_6 = arith.constant 0 : index
    %4 = vector.load %arg4[%c0_4, %c0_5, %c0_6] : memref<1x1x128xf32, #tpu.memory_space<vmem>>, vector<1x1x128xf32>
    %5 = vector.shape_cast %4 : vector<1x1x128xf32> to vector<1x128xf32>
    %6 = vector.broadcast %5 : vector<1x128xf32> to vector<32x128xf32>
    %7 = arith.addf %3, %6 : vector<32x128xf32>
    %8 = math.tanh %7 : vector<32x128xf32>
    %c0_7 = arith.constant 0 : index
    %c0_8 = arith.constant 0 : index
    %9 = vector.load %arg5[%c0_7, %c0_8] : memref<32x128xf32, #tpu.memory_space<vmem>>, vector<32x128xf32>
    tpu.vector_store %arg5[%c0_7, %c0_8], %8 {strides = array<i32>} : memref<32x128xf32, #tpu.memory_space<vmem>>, vector<32x128xf32>,
    return
  }
  func.func @transform_0(%arg0: i32, %arg1: memref<2xi32, #tpu.memory_space<smem>>) -> (i32, i32) {
    %c0_i32 = arith.constant 0 : i32
    %c0_i32_0 = arith.constant 0 : i32
    return %arg0, %c0_i32 : i32, i32
  }
  func.func @transform_1(%arg0: i32, %arg1: memref<2xi32, #tpu.memory_space<smem>>) -> (i32, i32, i32) {
    %0 = arith.index_cast %arg0 : i32 to index
    %1 = memref.load %arg1[%0] : memref<2xi32, #tpu.memory_space<smem>>
    %c0_i32 = arith.constant 0 : i32
    %c0_i32_0 = arith.constant 0 : i32
    %c0_i32_1 = arith.constant 0 : i32
    return %1, %c0_i32, %c0_i32_0 : i32, i32, i32
  }
  func.func @transform_2(%arg0: i32, %arg1: memref<2xi32, #tpu.memory_space<smem>>) -> (i32, i32, i32) {
    %0 = arith.index_cast %arg0 : i32 to index
    %1 = memref.load %arg1[%0] : memref<2xi32, #tpu.memory_space<smem>>
    %c0_i32 = arith.constant 0 : i32
    %c0_i32_0 = arith.constant 0 : i32
    %c0_i32_1 = arith.constant 0 : i32
    return %1, %c0_i32, %c0_i32_0 : i32, i32, i32
  }
  func.func @transform_3(%arg0: i32, %arg1: memref<2xi32, #tpu.memory_space<smem>>) -> (i32, i32) {
    %c0_i32 = arith.constant 0 : i32
    %c0_i32_0 = arith.constant 0 : i32
    return %arg0, %c0_i32 : i32, i32
  }
}

</mosaic_0001>

<llo_original>
// kernel: _hlinear_forward.1
$region0: #{_hlinear_forward.1}
  #allocation0 [shape = 'u32[]', space=smem, size = 0x4, offset = 0x4, fixed_abs, tag = 'smem constant byte address 0x4 - core index']
  #allocation1 [shape = 'u32[72,128]{1,0:T(1,128)}', space=vmem, size = 0x9000, scoped, tag = 'internal scratch']
  #allocation2 [shape = 's32[1]{0}', space=sflag, size = 0x4, scoped, tag = 'scoped memory for _hlinear_forward.1']
  #allocation3 [shape = 'u8[512]{0}', space=smem, size = 0x200, scoped, tag = 'prefetched SMEM operand 0']
  %s0 = inlined_call_operand.vmem [shape: s32[2], index: 0, kind: input, shape index: {}]
  %s1 = inlined_call_operand.vmem [shape: bf16[64,128], index: 1, kind: input, shape index: {}]
  %s2 = inlined_call_operand.hbm [shape: bf16[3,128,128], index: 2, kind: input, shape index: {}]
  %s3 = inlined_call_operand.vmem [shape: f32[3,1,128], index: 3, kind: input, shape index: {}]
  %s4 = inlined_call_operand.vmem [shape: f32[64,128], index: 4, kind: output, shape index: {}]
  %s5 = sld [smem:[#allocation0]]
  $region49: #{_hlinear_forward.1} parent=0
    _
  %s7 = ssub.s32 1, %s5
  %s8 = scalar_select 0, %s7, %s5
  %s10 = sshll.u32 %s0, 4
  %s11 = int_to_ptr.vmem [resolvable:$true] %s10
  %13 = dma.vmem_to_smem %s11, 16, [#allocation3], [#allocation2]
  %15 = dma.done [#allocation2], 16
  %16 = sfence
  $region1: #{_hlinear_forward.1} parent=0
    #allocation4 [shape = 'u8[65536]{0}', space=vmem, size = 0x10000, scoped, tag = 'input window, operand 2']
    #allocation5 [shape = 's32[2]{0}', space=sflag, size = 0x8, scoped, tag = 'scoped memory for _hlinear_forward.1']
    %17 = vsyncpa [#allocation5], 0
    %s18 = scalar_lea.sflag [#allocation5], 1
    %19 = vsyncpa %s18, 0
    loop: start=0, step=1, limit=4
    $region2: #{_hlinear_forward.1} parent=1 // loop_pre_header
      _
    $region3: #{_hlinear_forward.1} parent=1 // loop_header
      %s21 = sphi 0, %s25
      %p22 = scmp.ge.s32.totalorder %s21, 4
      %s31 = sphi 0, %s33
      %s34 = sphi 0, %s31
      %s35 = sphi 0, %s34
      %s51 = sphi 0, %s35
      %s59 = sphi 0, %s61
      %s62 = sphi 0, %s59
      %s63 = sphi 0, %s62
      %s79 = sphi 0, %s63
      %s87 = sphi 0, %s89
      %s90 = sphi 0, %s87
      %s91 = sphi 0, %s90
      %s107 = sphi 0, %s91
      %s113 = sphi 0, %s115
      %s116 = sphi 0, %s113
      %s117 = sphi 0, %s116
      %s133 = sphi 0, %s117
    $region4: #{_hlinear_forward.1} parent=1 // loop_header_branch
      %24 = sbr.rel (%p22) target = $region8
    $region5: #{_hlinear_forward.1} parent=1 // loop_body
      %s26 = ssub.s32 %s21, 1
      %s27 = ssub.s32 %s21, 2
      %s28 = sadd.s32 %s21, 1
      %s29 = ssub.s32 %s21, %s28
      %p30 = scmp.eq.s32.totalorder %s29, 0
      %s32 = sadd.s32 %s31, 1
      %s33 = scalar_select %p30, %s31, %s32
      %p36 = pneg %p30
      %p37 = scmp.eq.s32.totalorder %s21, 1
      %p38 = por %p36, %p37
      %p39 = scmp.ne.s32.totalorder %s31, %s34
      %p40 = scmp.eq.s32.totalorder %s21, 0
      %p41 = por %p39, %p40
      %p42 = scmp.ne.s32.totalorder %s31, %s34
      %p43 = scmp.eq.s32.totalorder %s26, 1
      %p44 = por %p42, %p43
      %p45 = scmp.ne.s32.totalorder %s34, %s35
      %p46 = scmp.eq.s32.totalorder %s26, 0
      %p47 = por %p45, %p46
      %p48 = scmp.ne.s32.totalorder %s34, %s35
      %p49 = scmp.eq.s32.totalorder %s27, 1
      %p50 = por %p48, %p49
      %p52 = scmp.ne.s32.totalorder %s35, %s51
      %p53 = scmp.eq.s32.totalorder %s27, 0
      %p54 = por %p52, %p53
      %s55 = sld [smem:[#allocation3 + %s21]]
      %s56 = sld [smem:[#allocation3 + %s28]]
      %s57 = ssub.s32 %s55, %s56
      %p58 = scmp.eq.s32.totalorder %s57, 0
      %s60 = sadd.s32 %s59, 1
      %s61 = scalar_select %p58, %s59, %s60
      %p64 = pneg %p58
      %p65 = scmp.eq.s32.totalorder %s21, 1
      %p66 = por %p64, %p65
      %p67 = scmp.ne.s32.totalorder %s59, %s62
      %p68 = scmp.eq.s32.totalorder %s21, 0
      %p69 = por %p67, %p68
      %p70 = scmp.ne.s32.totalorder %s59, %s62
      %p71 = scmp.eq.s32.totalorder %s26, 1
      %p72 = por %p70, %p71
      %p73 = scmp.ne.s32.totalorder %s62, %s63
      %p74 = scmp.eq.s32.totalorder %s26, 0
      %p75 = por %p73, %p74
      %p76 = scmp.ne.s32.totalorder %s62, %s63
      %p77 = scmp.eq.s32.totalorder %s27, 1
      %p78 = por %p76, %p77
      %p80 = scmp.ne.s32.totalorder %s63, %s79
      %p81 = scmp.eq.s32.totalorder %s27, 0
      %p82 = por %p80, %p81
      %s83 = sld [smem:[#allocation3 + %s21]]
      %s84 = sld [smem:[#allocation3 + %s28]]
      %s85 = ssub.s32 %s83, %s84
      %p86 = scmp.eq.s32.totalorder %s85, 0
      %s88 = sadd.s32 %s87, 1
      %s89 = scalar_select %p86, %s87, %s88
      %p92 = pneg %p86
      %p93 = scmp.eq.s32.totalorder %s21, 1
      %p94 = por %p92, %p93
      %p95 = scmp.ne.s32.totalorder %s87, %s90
      %p96 = scmp.eq.s32.totalorder %s21, 0
      %p97 = por %p95, %p96
      %p98 = scmp.ne.s32.totalorder %s87, %s90
      %p99 = scmp.eq.s32.totalorder %s26, 1
      %p100 = por %p98, %p99
      %p101 = scmp.ne.s32.totalorder %s90, %s91
      %p102 = scmp.eq.s32.totalorder %s26, 0
      %p103 = por %p101, %p102
      %p104 = scmp.ne.s32.totalorder %s90, %s91
      %p105 = scmp.eq.s32.totalorder %s27, 1
      %p106 = por %p104, %p105
      %p108 = scmp.ne.s32.totalorder %s91, %s107
      %p109 = scmp.eq.s32.totalorder %s27, 0
      %p110 = por %p108, %p109
      %s111 = ssub.s32 %s21, %s28
      %p112 = scmp.eq.s32.totalorder %s111, 0
      %s114 = sadd.s32 %s113, 1
      %s115 = scalar_select %p112, %s113, %s114
      %p118 = pneg %p112
      %p119 = scmp.eq.s32.totalorder %s21, 1
      %p120 = por %p118, %p119
      %p121 = scmp.ne.s32.totalorder %s113, %s116
      %p122 = scmp.eq.s32.totalorder %s21, 0
      %p123 = por %p121, %p122
      %p124 = scmp.ne.s32.totalorder %s113, %s116
      %p125 = scmp.eq.s32.totalorder %s26, 1
      %p126 = por %p124, %p125
      %p127 = scmp.ne.s32.totalorder %s116, %s117
      %p128 = scmp.eq.s32.totalorder %s26, 0
      %p129 = por %p127, %p128
      %p130 = scmp.ne.s32.totalorder %s116, %s117
      %p131 = scmp.eq.s32.totalorder %s27, 1
      %p132 = por %p130, %p131
      %p134 = scmp.ne.s32.totalorder %s117, %s133
      %p135 = scmp.eq.s32.totalorder %s27, 0
      %p136 = por %p134, %p135
      %p137 = scmp.le.s32.totalorder 1, %s21
      %p138 = scmp.lt.s32.totalorder %s21, 3
      %p139 = pnand %p137, %p138
      %p140 = pneg %p139
      // Predicated region
      $region9: #{_hlinear_forward.1} parent=5 // pred_check
        _
      $region10: #{_hlinear_forward.1} parent=5 // pred_check_branch
        %142 = sbr.rel (%p139) target = $region12
      $region11: #{_hlinear_forward.1} parent=5 // pred_region
        %s143 = ssub.s32 %s21, 1
      $region12: #{_hlinear_forward.1} parent=5 // pred_fallthru
        _
      %p144 = scmp.lt.s32.totalorder %s21, 2
      // Predicated region
      $region13: #{_hlinear_forward.1} parent=5 // pred_check
        %p145 = pneg %p144
      $region14: #{_hlinear_forward.1} parent=5 // pred_check_branch
        %147 = sbr.rel (%p145) target = $region16
      $region15: #{_hlinear_forward.1} parent=5 // pred_region
        // Predicated region
        $region17: #{_hlinear_forward.1} parent=15 // pred_check
          %p148 = pneg %p41
        $region18: #{_hlinear_forward.1} parent=15 // pred_check_branch
          %150 = sbr.rel (%p148) target = $region20
        $region19: #{_hlinear_forward.1} parent=15 // pred_region
          %s151 = smul.u32 4, %s21
          %p152 = scmp.lt.s32.totalorder %s151, 7
          %s153 = scalar_select %p152, %s151, 7
          %s154 = smul.addr %s153, 4
          %s155 = scalar_lea.vmem %s1, %s154
          %s156 = smul.u32 4, %s21
        $region20: #{_hlinear_forward.1} parent=15 // pred_fallthru
          _
        // Predicated region
        $region21: #{_hlinear_forward.1} parent=15 // pred_check
          %p157 = pneg %p69
        $region22: #{_hlinear_forward.1} parent=15 // pred_check_branch
          %159 = sbr.rel (%p157) target = $region24
        $region23: #{_hlinear_forward.1} parent=15 // pred_region
          %s160 = sand.u32 %s59, 1
          %s161 = scalar_lea.sflag [#allocation5], %s160
          %s162 = sand.u32 %s59, 1
          %s163 = smul.addr %s162, 64
          %s164 = scalar_lea.vmem [#allocation4], %s163
          %s165 = sld [smem:[#allocation3 + %s21]]
          %167 = vsyncadd %s161, 0
          %s168 = smul.addr %s165, 16
          %s169 = smul.addr %s168, 4
          %s170 = scalar_lea.hbm %s2, %s169
          %s171 = sshll.u32 %s170, 4
          %s172 = int_to_ptr.hbm [resolvable:$true] %s171
          %s173 = sshll.u32 %s164, 4
          %s174 = int_to_ptr.vmem [resolvable:$true] %s173
          %179 = dma.hbm_to_vmem [thread:$0]  %s172, 1024, %s174, %s161, 64, 64, 4
        $region24: #{_hlinear_forward.1} parent=15 // pred_fallthru
          _
        // Predicated region
        $region25: #{_hlinear_forward.1} parent=15 // pred_check
          %p180 = pneg %p97
        $region26: #{_hlinear_forward.1} parent=15 // pred_check_branch
          %182 = sbr.rel (%p180) target = $region28
        $region27: #{_hlinear_forward.1} parent=15 // pred_region
          %s183 = sld [smem:[#allocation3 + %s21]]
          %p184 = scmp.lt.s32.totalorder %s183, 2
          %s185 = scalar_select %p184, %s183, 2
          %s186 = scalar_lea.vmem %s3, %s185
          %s187 = sld [smem:[#allocation3 + %s21]]
        $region28: #{_hlinear_forward.1} parent=15 // pred_fallthru
          _
      $region16: #{_hlinear_forward.1} parent=5 // pred_fallthru
        _
      %p188 = scmp.le.s32.totalorder 1, %s21
      %p189 = scmp.lt.s32.totalorder %s21, 3
      %p190 = pnand %p188, %p189
      %p191 = pneg %p190
      // Predicated region
      $region29: #{_hlinear_forward.1} parent=5 // pred_check
        _
      $region30: #{_hlinear_forward.1} parent=5 // pred_check_branch
        %193 = sbr.rel (%p190) target = $region32
      $region31: #{_hlinear_forward.1} parent=5 // pred_region
        %s194 = ssub.s32 %s21, 1
        %s195 = sand.u32 %s62, 1
        %s196 = scalar_lea.sflag [#allocation5], %s195
        %s197 = sand.u32 %s62, 1
        %s198 = smul.addr %s197, 64
        %s199 = scalar_lea.vmem [#allocation4], %s198
        // Predicated region
        $region33: #{_hlinear_forward.1} parent=31 // pred_check
          %p200 = pneg %p75
        $region34: #{_hlinear_forward.1} parent=31 // pred_check_branch
          %202 = sbr.rel (%p200) target = $region36
        $region35: #{_hlinear_forward.1} parent=31 // pred_region
          %204 = dma.done %s196, 1024
        $region36: #{_hlinear_forward.1} parent=31 // pred_fallthru
          _
        %s205 = smul.u32 4, %s26
        %p206 = scmp.lt.s32.totalorder %s205, 7
        %s207 = scalar_select %p206, %s205, 7
        %s208 = smul.addr %s207, 4
        %s209 = scalar_lea.vmem %s1, %s208
        %p210 = pneg %p47
        %p211 = pneg %p44
        %s212 = sand.u32 %s62, 1
        %s213 = scalar_lea.sflag [#allocation5], %s212
        %s214 = sand.u32 %s62, 1
        %s215 = smul.addr %s214, 64
        %s216 = scalar_lea.vmem [#allocation4], %s215
        %p217 = pneg %p75
        %p218 = pneg %p72
        %s219 = sld [smem:[#allocation3 + %s26]]
        %p220 = scmp.lt.s32.totalorder %s219, 2
        %s221 = scalar_select %p220, %s219, 2
        %s222 = scalar_lea.vmem %s3, %s221
        %p223 = pneg %p103
        %p224 = pneg %p100
        %p225 = pneg %p129
        %p226 = pneg %p126
        %s227 = smul.u32 4, %s26
        %p228 = scmp.lt.s32.totalorder %s227, 7
        %s229 = scalar_select %p228, %s227, 7
        %s230 = smul.addr %s229, 8
        %s231 = scalar_lea.vmem %s4, %s230
        %s232 = smul.u32 4, %s26
        %p233 = scmp.lt.s32.totalorder %s232, 7
        %s234 = scalar_select %p233, %s232, 7
        %s235 = smul.addr %s234, 4
        %s236 = scalar_lea.vmem %s1, %s235
        %s237 = smul.u32 4, %s26
        %s238 = sld [smem:[#allocation3 + %s26]]
        %s239 = sld [smem:[#allocation3 + %s26]]
        %p240 = scmp.lt.s32.totalorder %s239, 2
        %s241 = scalar_select %p240, %s239, 2
        %s242 = scalar_lea.vmem %s3, %s241
        %s243 = sld [smem:[#allocation3 + %s26]]
        %s244 = smul.u32 4, %s26
        %p245 = scmp.lt.s32.totalorder %s244, 7
        %s246 = scalar_select %p245, %s244, 7
        %s247 = smul.addr %s246, 8
        %s248 = scalar_lea.vmem %s4, %s247
        %s249 = smul.u32 4, %s26
        %v250 = vld [vmem:[%s236] sm:$0xf]
        %v251 = vld [vmem:[%s236 + $0x4] sm:$0xf]
        %v252 = vld [vmem:[%s236 + $0x8] sm:$0xf]
        %v253 = vld [vmem:[%s236 + $0xc] sm:$0xf]
        %v254 = vld [vmem:[%s199] sm:$0xf]
        %v255 = vld [vmem:[%s199 + $0x4] sm:$0xf]
        %v256 = vld [vmem:[%s199 + $0x8] sm:$0xf]
        %v257 = vld [vmem:[%s199 + $0xc] sm:$0xf]
        %v258 = vld [vmem:[%s199 + $0x10] sm:$0xf]
        %v259 = vld [vmem:[%s199 + $0x14] sm:$0xf]
        %v260 = vld [vmem:[%s199 + $0x18] sm:$0xf]
        %v261 = vld [vmem:[%s199 + $0x1c] sm:$0xf]
        %v262 = vld [vmem:[%s199 + $0x20] sm:$0xf]
        %v263 = vld [vmem:[%s199 + $0x24] sm:$0xf]
        %v264 = vld [vmem:[%s199 + $0x28] sm:$0xf]
        %v265 = vld [vmem:[%s199 + $0x2c] sm:$0xf]
        %v266 = vld [vmem:[%s199 + $0x30] sm:$0xf]
        %v267 = vld [vmem:[%s199 + $0x34] sm:$0xf]
        %v268 = vld [vmem:[%s199 + $0x38] sm:$0xf]
        %v269 = vld [vmem:[%s199 + $0x3c] sm:$0xf]
        %v270 = vld [vmem:[%s242] sm:$0x1]
        %v272 = vperm.slane %v270, 0
        %v278 = vunpack.c.l.b16 %v250
        %v279 = vunpack.c.l.b16 %v251
        %v280 = vunpack.c.l.b16 %v252
        %v281 = vunpack.c.l.b16 %v253
        %v282 = vpack.c.b16 %v279, %v278
        %v283 = vpack.c.b16 %v281, %v280
        %v302 = vunpack.c.l.b16 %v254
        %v303 = vunpack.c.l.b16 %v255
        %v304 = vunpack.c.l.b16 %v256
        %v305 = vunpack.c.l.b16 %v257
        %v306 = vunpack.c.l.b16 %v258
        %v307 = vunpack.c.l.b16 %v259
        %v308 = vunpack.c.l.b16 %v260
        %v309 = vunpack.c.l.b16 %v261
        %v310 = vunpack.c.l.b16 %v262
        %v311 = vunpack.c.l.b16 %v263
        %v312 = vunpack.c.l.b16 %v264
        %v313 = vunpack.c.l.b16 %v265
        %v314 = vunpack.c.l.b16 %v266
        %v315 = vunpack.c.l.b16 %v267
        %v316 = vunpack.c.l.b16 %v268
        %v317 = vunpack.c.l.b16 %v269
        %v318 = vpack.c.b16 %v303, %v302
        %v319 = vpack.c.b16 %v305, %v304
        %v320 = vpack.c.b16 %v307, %v306
        %v321 = vpack.c.b16 %v309, %v308
        %v322 = vpack.c.b16 %v311, %v310
        %v323 = vpack.c.b16 %v313, %v312
        %v324 = vpack.c.b16 %v315, %v314
        %v325 = vpack.c.b16 %v317, %v316
        %334 = vmatpush.bf16.msra.mxu0 %v325
        %335 = vmatpush.bf16.msra.mxu0 %v324
        %336 = vmatpush.bf16.msra.mxu0 %v323
        %337 = vmatpush.bf16.msra.mxu0 %v322
        %338 = vmatpush.bf16.msra.mxu0 %v321
        %339 = vmatpush.bf16.msra.mxu0 %v320
        %340 = vmatpush.bf16.msra.mxu0 %v319
        %341 = vmatpush.bf16.msra.mxu0 %v318
        %342 = vmatmul.bf16.gmra.mxu0 %v282
        %v343 = vpop.f32.mrf.mxu0
        %v344 = vadd.f32 %v272, %v343
        %v345 = vpop.f32.mrf.mxu0
        %v346 = vadd.f32 %v272, %v345
        %347 = vmatmul.bf16.gmra.mxu0 %v283
        %v348 = vpop.f32.mrf.mxu0
        %v349 = vadd.f32 %v272, %v348
        %v350 = vpop.f32.mrf.mxu0
        %v351 = vadd.f32 %v272, %v350
        %352 = vdwg.mxu0
        %v353 = vtanh.pop %v344
        %v354 = vtanh.pop %v346
        %v355 = vtanh.pop %v349
        %v356 = vtanh.pop %v351
        %357 = vst [vmem:[%s248] sm:$0xff] %v353
        %358 = vst [vmem:[%s248 + $0x8] sm:$0xff] %v354
        %359 = vst [vmem:[%s248 + $0x10] sm:$0xff] %v355
        %360 = vst [vmem:[%s248 + $0x18] sm:$0xff] %v356
        %s361 = smul.u32 4, %s26
        %p362 = scmp.lt.s32.totalorder %s361, 7
        %s363 = scalar_select %p362, %s361, 7
        %s364 = smul.addr %s363, 8
        %s365 = scalar_lea.vmem %s4, %s364
        // Predicated region
        $region37: #{_hlinear_forward.1} parent=31 // pred_check
          %p366 = pneg %p126
        $region38: #{_hlinear_forward.1} parent=31 // pred_check_branch
          %368 = sbr.rel (%p366) target = $region40
        $region39: #{_hlinear_forward.1} parent=31 // pred_region
          %s369 = smul.u32 4, %s26
        $region40: #{_hlinear_forward.1} parent=31 // pred_fallthru
          _
      $region32: #{_hlinear_forward.1} parent=5 // pred_fallthru
        _
      %p370 = scmp.le.s32.totalorder 2, %s21
      // Predicated region
      $region41: #{_hlinear_forward.1} parent=5 // pred_check
        %p371 = pneg %p370
      $region42: #{_hlinear_forward.1} parent=5 // pred_check_branch
        %373 = sbr.rel (%p371) target = $region44
      $region43: #{_hlinear_forward.1} parent=5 // pred_region
        %s374 = ssub.s32 %s21, 2
        // Predicated region
        $region45: #{_hlinear_forward.1} parent=43 // pred_check
          %p375 = pneg %p132
        $region46: #{_hlinear_forward.1} parent=43 // pred_check_branch
          %377 = sbr.rel (%p375) target = $region48
        $region47: #{_hlinear_forward.1} parent=43 // pred_region
          %s378 = smul.u32 4, %s27
          %p379 = scmp.lt.s32.totalorder %s378, 7
          %s380 = scalar_select %p379, %s378, 7
          %s381 = smul.addr %s380, 8
          %s382 = scalar_lea.vmem %s4, %s381
        $region48: #{_hlinear_forward.1} parent=43 // pred_fallthru
          _
      $region44: #{_hlinear_forward.1} parent=5 // pred_fallthru
        _
    $region6: #{_hlinear_forward.1} parent=1 // loop_footer
      %s25 = sadd.s32 1, %s21
    $region7: #{_hlinear_forward.1} parent=1 // loop_footer_branch
      %20 = sbr.rel target = $region3
    $region8: #{_hlinear_forward.1} parent=1 // loop_exit
      _
    %383 = vsyncpa [#allocation5], 1
    %s384 = scalar_lea.sflag [#allocation5], 1
    %385 = vsyncpa %s384, 1

</llo_original>
